<compile_context>
chip_gen: v5e
topology: v5e:2x2
jax: 0.10.0
libtpu: 0.0.40
codegen_flags: <defaults>
</compile_context>

<pallas_src>
import jax
import jax.numpy as jnp
from jax import lax
from jax.experimental import pallas as pl
from jax.experimental.pallas import tpu as pltpu

EPS = 1e-5
HIDDEN = 100
HIDDEN_PAD = 128  # one full lane width


def _round_up(a: int, b: int) -> int:
    return ((a + b - 1) // b) * b


def _cdiv(a: int, b: int) -> int:
    return (a + b - 1) // b


def _vmem_budget_bytes() -> int:
    """Generation-aware VMEM budget (v7x: 64 MiB physical, v5e/v6e: 128 MiB)."""
    try:
        cap = int(pltpu.get_tpu_info().vmem_capacity_bytes)
    except Exception:
        cap = 64 * 1024 * 1024  # conservative fallback = v7x size
    # Use ~3/4 of physical VMEM; never request more than 112 MiB.
    return min((cap * 3) // 4, 112 * 1024 * 1024)


def _reward_kernel(x1_ref, x2_ref, w1a_ref, w1b_ref, b1_ref, w2_ref, b2_ref,
                   out_ref):
    # x1_ref: (tm, F1), x2_ref: (tm, F2h) f32. BatchNorm already folded into W1/b1.
    z = jnp.dot(x1_ref[...], w1a_ref[...], preferred_element_type=jnp.float32)
    z = z + jnp.dot(x2_ref[...], w1b_ref[...], preferred_element_type=jnp.float32)
    z = z + b1_ref[...]                                   # (tm, 128)
    # sigmoid(z) = 0.5*(tanh(z/2)+1): one EUP push per vreg (vs exp+reciprocal).
    h = 0.5 * jnp.tanh(0.5 * z) + 0.5                     # (tm, 128)
    # Lane-dense projection: (1,128) x (tm,128) contracting last dims -> (1, tm).
    # Padded hidden columns carry h == 0.5 but hit zero entries of w2 -> inert.
    y = lax.dot_general(w2_ref[...], h, (((1,), (1,)), ((), ())),
                        preferred_element_type=jnp.float32)
    out_ref[...] = y + b2_ref[0, 0]                       # (1, tm), lane dense


@jax.jit
def reward_model_forward(x1, x2, params):
    """x1, x2: (B, state_space) (or (state_space,)) float32. Returns (B,) / scalar."""
    squeeze_batch = (x1.ndim == 1)
    if squeeze_batch:
        x1 = x1[None, :]
        x2 = x2[None, :]

    gamma, beta, w1, b1, w2, b2 = params

    x1 = x1.astype(jnp.float32)
    x2 = x2.astype(jnp.float32)
    B, F1 = x1.shape
    F2h = x2.shape[1]
    F2 = F1 + F2h

    # ---- training-mode BatchNorm stats (biased variance) over the FULL batch,
    # computed per half (the concat is never materialized) and folded into W1/b1.
    g = gamma.astype(jnp.float32)
    bt = beta.astype(jnp.float32)
    m1 = jnp.mean(x1, axis=0)
    v1 = jnp.mean(jnp.square(x1 - m1), axis=0)
    m2 = jnp.mean(x2, axis=0)
    v2 = jnp.mean(jnp.square(x2 - m2), axis=0)
    s1 = g[:F1] * lax.rsqrt(v1 + EPS)
    s2 = g[F1:] * lax.rsqrt(v2 + EPS)
    sh1 = bt[:F1] - m1 * s1
    sh2 = bt[F1:] - m2 * s2

    w1t = w1.astype(jnp.float32).T                        # (F2, 100)
    w1a = w1t[:F1] * s1[:, None]                          # (F1, 100)
    w1b = w1t[F1:] * s2[:, None]                          # (F2h, 100)
    b1f = b1.astype(jnp.float32) + sh1 @ w1t[:F1] + sh2 @ w1t[F1:]   # (100,)

    # Pad hidden 100 -> 128 (lane-dense vregs). Padded columns are inert.
    w1a_p = jnp.zeros((F1, HIDDEN_PAD), jnp.float32).at[:, :HIDDEN].set(w1a)
    w1b_p = jnp.zeros((F2h, HIDDEN_PAD), jnp.float32).at[:, :HIDDEN].set(w1b)
    b1_p = jnp.zeros((1, HIDDEN_PAD), jnp.float32).at[:, :HIDDEN].set(b1f)
    w2_p = jnp.zeros((1, HIDDEN_PAD), jnp.float32).at[:, :HIDDEN].set(
        w2.astype(jnp.float32))
    b2_s = jnp.reshape(b2.astype(jnp.float32), (1, 1))    # scalar -> SMEM

    # ---- batch tiling: byte-budget tm, no over-padding, >=2 steps when big.
    row_bytes = 4 * F2
    budget = _vmem_budget_bytes()
    weight_bytes = 2 * 4 * HIDDEN_PAD * (F2 + 2)          # double-buffered residents
    avail = max(budget - weight_bytes - (4 << 20), 1 << 20)
    tm_cap = max(8, avail // (2 * (row_bytes + 4)))       # 2x-buffered x tiles + out
    tm_target = max(1024, (4 << 20) // max(row_bytes, 1)) # ~4 MiB of rows per tile
    tm = max(8, min(tm_target, tm_cap, _round_up(B, 8)))
    tm = _round_up(tm, 8)

    num_tiles = _cdiv(B, tm)
    if B >= 4096:
        num_tiles = max(num_tiles, 4)                     # keep v7x's 2 TCs busy
    elif B >= 1024:
        num_tiles = max(num_tiles, 2)
    tm = _round_up(_cdiv(B, num_tiles), 8)                # <= ~7 pad rows per tile
    num_tiles = _cdiv(B, tm)
    bp = num_tiles * tm

    cost = pl.CostEstimate(
        flops=2 * bp * F2 * HIDDEN_PAD + 2 * bp * HIDDEN_PAD,
        transcendentals=bp * HIDDEN_PAD,
        bytes_accessed=4 * (bp * F2 + F2 * HIDDEN_PAD + 2 * HIDDEN_PAD + bp + 1),
    )

    out = pl.pallas_call(
        _reward_kernel,
        out_shape=jax.ShapeDtypeStruct((num_tiles, tm), jnp.float32),
        grid=(num_tiles,),
        in_specs=[
            pl.BlockSpec((tm, F1), lambda i: (i, 0)),            # x1 rows, tiled
            pl.BlockSpec((tm, F2h), lambda i: (i, 0)),           # x2 rows, tiled
            pl.BlockSpec((F1, HIDDEN_PAD), lambda i: (0, 0)),    # W1 chunk (folded)
            pl.BlockSpec((F2h, HIDDEN_PAD), lambda i: (0, 0)),   # W1 chunk (folded)
            pl.BlockSpec((1, HIDDEN_PAD), lambda i: (0, 0)),     # b1 (folded)
            pl.BlockSpec((1, HIDDEN_PAD), lambda i: (0, 0)),     # W2 row
            pl.BlockSpec(memory_space=pltpu.MemorySpace.SMEM),   # b2 scalar
        ],
        out_specs=pl.BlockSpec((1, tm), lambda i: (i, 0)),       # lane-dense output
        compiler_params=pltpu.CompilerParams(
            dimension_semantics=("parallel",),
            vmem_limit_bytes=int(budget),
        ),
        cost_estimate=cost,
    )(x1, x2, w1a_p, w1b_p, b1_p, w2_p, b2_s)

    res = out.reshape(-1)[:B]                             # drop tail padding
    if squeeze_batch:
        res = res[0]
    return res


def _reference_forward(x1, x2, params):
    """Pure-JAX reference matching the PyTorch module (training-mode BN)."""
    gamma, beta, w1, b1, w2, b2 = params
    x = jnp.concatenate([x1, x2], axis=1).astype(jnp.float32)
    mean = jnp.mean(x, axis=0)
    var = jnp.mean(jnp.square(x - mean), axis=0)
    xn = (x - mean) * lax.rsqrt(var + EPS) * gamma + beta
    h = jax.nn.sigmoid(xn @ w1.T + b1)
    return (h @ w2.T + b2)[:, 0]


def init_params(state_space, key):
    """Deterministic parameter init matching the PyTorch module's shapes."""
    f_in = 2 * state_space
    k1, k2, k3, k4 = jax.random.split(key, 4)

    # BatchNorm1d(2*state_space): weight=1, bias=0 (PyTorch default init).
    gamma = jnp.ones((f_in,), jnp.float32)
    beta = jnp.zeros((f_in,), jnp.float32)

    # Linear(2*state_space, 100): U(-1/sqrt(fan_in), 1/sqrt(fan_in))
    bound1 = 1.0 / jnp.sqrt(jnp.float32(f_in))
    w1 = jax.random.uniform(k1, (HIDDEN, f_in), jnp.float32, -bound1, bound1)
    b1 = jax.random.uniform(k2, (HIDDEN,), jnp.float32, -bound1, bound1)

    # Linear(100, 1)
    bound2 = 1.0 / jnp.sqrt(jnp.float32(HIDDEN))
    w2 = jax.random.uniform(k3, (1, HIDDEN), jnp.float32, -bound2, bound2)
    b2 = jax.random.uniform(k4, (1,), jnp.float32, -bound2, bound2)

    return gamma, beta, w1, b1, w2, b2


if __name__ == "__main__":
    state_space = 16
    batch = 8

    key = jax.random.PRNGKey(0)
    kp, kx1, kx2 = jax.random.split(key, 3)

    params = init_params(state_space, kp)
    x1 = jax.random.normal(kx1, (batch, state_space), jnp.float32)
    x2 = jax.random.normal(kx2, (batch, state_space), jnp.float32)

    res = reward_model_forward(x1, x2, params)
    jax.block_until_ready(res)
    assert res.shape == (batch,), res.shape
    assert bool(jnp.all(jnp.isfinite(res)))

    ref = _reference_forward(x1, x2, params)
    assert bool(jnp.allclose(res, ref, rtol=1e-3, atol=1e-3)), (res, ref)

    print("KERNEL_OK")
</pallas_src>

<mosaic_0001>
module attributes {stable_mosaic.version = 11 : i64} {
  func.func @_reward_kernel(%arg0: i32, %arg1: memref<8x16xf32, #tpu.memory_space<vmem>>, %arg2: memref<8x16xf32, #tpu.memory_space<vmem>>, %arg3: memref<16x128xf32, #tpu.memory_space<vmem>>, %arg4: memref<16x128xf32, #tpu.memory_space<vmem>>, %arg5: memref<1x128xf32, #tpu.memory_space<vmem>>, %arg6: memref<1x128xf32, #tpu.memory_space<vmem>>, %arg7: memref<1x1xf32, #tpu.memory_space<smem>>, %arg8: memref<1x8xf32, #tpu.memory_space<vmem>>) attributes {dimension_semantics = [#tpu.dimension_semantics<parallel>], iteration_bounds = array<i64: 1>, scalar_prefetch = 0 : i64, scratch_operands = 0 : i64, tpu.core_type = #tpu.core_type<tc>, window_params = [{transform_indices = @transform_0, window_bounds = array<i64: 8, 16>}, {transform_indices = @transform_1, window_bounds = array<i64: 8, 16>}, {pipeline_mode = #tpu.pipeline_mode<synchronous>, transform_indices = @transform_2, window_bounds = array<i64: 16, 128>}, {pipeline_mode = #tpu.pipeline_mode<synchronous>, transform_indices = @transform_3, window_bounds = array<i64: 16, 128>}, {pipeline_mode = #tpu.pipeline_mode<synchronous>, transform_indices = @transform_4, window_bounds = array<i64: 1, 128>}, {pipeline_mode = #tpu.pipeline_mode<synchronous>, transform_indices = @transform_5, window_bounds = array<i64: 1, 128>}, {transform_indices = @transform_6, window_bounds = array<i64: 1, 1>}, {transform_indices = @transform_7, window_bounds = array<i64: 1, 8>}]} {
    %c0 = arith.constant 0 : index
    %c0_0 = arith.constant 0 : index
    %0 = vector.load %arg1[%c0, %c0_0] : memref<8x16xf32, #tpu.memory_space<vmem>>, vector<8x16xf32>
    %c0_1 = arith.constant 0 : index
    %c0_2 = arith.constant 0 : index
    %1 = vector.load %arg3[%c0_1, %c0_2] : memref<16x128xf32, #tpu.memory_space<vmem>>, vector<16x128xf32>
    %cst = arith.constant dense<0.000000e+00> : vector<8x128xf32>
    %2 = tpu.matmul %0, %1, %cst {dimension_numbers = #tpu.dot_dimension_numbers<[1], [0], [0], [1], [0, 0, 1, 1], [], []>} : vector<8x16xf32>, vector<16x128xf32>, vector<8x128xf32> -> vector<8x128xf32>
    %c0_3 = arith.constant 0 : index
    %c0_4 = arith.constant 0 : index
    %3 = vector.load %arg2[%c0_3, %c0_4] : memref<8x16xf32, #tpu.memory_space<vmem>>, vector<8x16xf32>
    %c0_5 = arith.constant 0 : index
    %c0_6 = arith.constant 0 : index
    %4 = vector.load %arg4[%c0_5, %c0_6] : memref<16x128xf32, #tpu.memory_space<vmem>>, vector<16x128xf32>
    %cst_7 = arith.constant dense<0.000000e+00> : vector<8x128xf32>
    %5 = tpu.matmul %3, %4, %cst_7 {dimension_numbers = #tpu.dot_dimension_numbers<[1], [0], [0], [1], [0, 0, 1, 1], [], []>} : vector<8x16xf32>, vector<16x128xf32>, vector<8x128xf32> -> vector<8x128xf32>
    %6 = arith.addf %2, %5 : vector<8x128xf32>
    %c0_8 = arith.constant 0 : index
    %c0_9 = arith.constant 0 : index
    %7 = vector.load %arg5[%c0_8, %c0_9] : memref<1x128xf32, #tpu.memory_space<vmem>>, vector<1x128xf32>
    %8 = vector.broadcast %7 : vector<1x128xf32> to vector<8x128xf32>
    %9 = arith.addf %6, %8 : vector<8x128xf32>
    %cst_10 = arith.constant 5.000000e-01 : f32
    %10 = vector.broadcast %cst_10 : f32 to vector<8x128xf32>
    %11 = arith.mulf %10, %9 : vector<8x128xf32>
    %12 = math.tanh %11 : vector<8x128xf32>
    %cst_11 = arith.constant 5.000000e-01 : f32
    %13 = vector.broadcast %cst_11 : f32 to vector<8x128xf32>
    %14 = arith.mulf %13, %12 : vector<8x128xf32>
    %cst_12 = arith.constant 5.000000e-01 : f32
    %15 = vector.broadcast %cst_12 : f32 to vector<8x128xf32>
    %16 = arith.addf %14, %15 : vector<8x128xf32>
    %c0_13 = arith.constant 0 : index
    %c0_14 = arith.constant 0 : index
    %17 = vector.load %arg6[%c0_13, %c0_14] : memref<1x128xf32, #tpu.memory_space<vmem>>, vector<1x128xf32>
    %cst_15 = arith.constant dense<0.000000e+00> : vector<1x8xf32>
    %18 = tpu.matmul %17, %16, %cst_15 {dimension_numbers = #tpu.dot_dimension_numbers<[1], [1], [0], [0], [0, 0, 1, 0], [], []>} : vector<1x128xf32>, vector<8x128xf32>, vector<1x8xf32> -> vector<1x8xf32>
    %c0_16 = arith.constant 0 : index
    %c0_17 = arith.constant 0 : index
    %19 = memref.load %arg7[%c0_16, %c0_17] : memref<1x1xf32, #tpu.memory_space<smem>>
    %20 = vector.broadcast %19 : f32 to vector<1x8xf32>
    %21 = arith.addf %18, %20 : vector<1x8xf32>
    %c0_18 = arith.constant 0 : index
    %c0_19 = arith.constant 0 : index
    %22 = vector.load %arg8[%c0_18, %c0_19] : memref<1x8xf32, #tpu.memory_space<vmem>>, vector<1x8xf32>
    tpu.vector_store %arg8[%c0_18, %c0_19], %21 {strides = array<i32>} : memref<1x8xf32, #tpu.memory_space<vmem>>, vector<1x8xf32>,
    return
  }
  func.func @transform_0(%arg0: i32) -> (i32, i32) {
    %c0_i32 = arith.constant 0 : i32
    %c0_i32_0 = arith.constant 0 : i32
    return %arg0, %c0_i32 : i32, i32
  }
  func.func @transform_1(%arg0: i32) -> (i32, i32) {
    %c0_i32 = arith.constant 0 : i32
    %c0_i32_0 = arith.constant 0 : i32
    return %arg0, %c0_i32 : i32, i32
  }
  func.func @transform_2(%arg0: i32) -> (i32, i32) {
    %c0_i32 = arith.constant 0 : i32
    %c0_i32_0 = arith.constant 0 : i32
    %c0_i32_1 = arith.constant 0 : i32
    return %c0_i32, %c0_i32_0 : i32, i32
  }
  func.func @transform_3(%arg0: i32) -> (i32, i32) {
    %c0_i32 = arith.constant 0 : i32
    %c0_i32_0 = arith.constant 0 : i32
    %c0_i32_1 = arith.constant 0 : i32
    return %c0_i32, %c0_i32_0 : i32, i32
  }
  func.func @transform_4(%arg0: i32) -> (i32, i32) {
    %c0_i32 = arith.constant 0 : i32
    %c0_i32_0 = arith.constant 0 : i32
    %c0_i32_1 = arith.constant 0 : i32
    return %c0_i32, %c0_i32_0 : i32, i32
  }
  func.func @transform_5(%arg0: i32) -> (i32, i32) {
    %c0_i32 = arith.constant 0 : i32
    %c0_i32_0 = arith.constant 0 : i32
    %c0_i32_1 = arith.constant 0 : i32
    return %c0_i32, %c0_i32_0 : i32, i32
  }
  func.func @transform_6(%arg0: i32) -> (i32, i32) {
    %c0_i32 = arith.constant 0 : i32
    %c0_i32_0 = arith.constant 0 : i32
    %c0_i32_1 = arith.constant 0 : i32
    return %c0_i32, %c0_i32_0 : i32, i32
  }
  func.func @transform_7(%arg0: i32) -> (i32, i32) {
    %c0_i32 = arith.constant 0 : i32
    %c0_i32_0 = arith.constant 0 : i32
    return %arg0, %c0_i32 : i32, i32
  }
}

</mosaic_0001>

<llo_original>
// kernel: reward_model_forward.1
$region0: #{reward_model_forward.1}
  #allocation0 [shape = 'u32[]', space=smem, size = 0x4, offset = 0x4, fixed_abs, tag = 'smem constant byte address 0x4 - core index']
  #allocation1 [shape = 'u32[72,128]{1,0:T(1,128)}', space=vmem, size = 0x9000, scoped, tag = 'internal scratch']
  #allocation2 [shape = 'f32[1,1]{1,0:T(1,128)S(6)}', space=smem, size = 0x200, scoped, tag = 'scoped memory for reward_model_forward.1']
  %s0 = inlined_call_operand.vmem [shape: f32[8,16], index: 0, kind: input, shape index: {}]
  %s1 = inlined_call_operand.vmem [shape: f32[8,16], index: 1, kind: input, shape index: {}]
  %s2 = inlined_call_operand.vmem [shape: f32[16,128], index: 2, kind: input, shape index: {}]
  %s3 = inlined_call_operand.vmem [shape: f32[16,128], index: 3, kind: input, shape index: {}]
  %s4 = inlined_call_operand.vmem [shape: f32[1,128], index: 4, kind: input, shape index: {}]
  %s5 = inlined_call_operand.vmem [shape: f32[1,128], index: 5, kind: input, shape index: {}]
  %s6 = inlined_call_operand.<no memory space> [shape: f32[1,1], index: 6, kind: input, shape index: {}]
  %s7 = inlined_call_operand.hbm [shape: f32[1,8], index: 7, kind: output, shape index: {}]
  %s8 = sld [smem:[#allocation0]]
  $region38: #{reward_model_forward.1} parent=0
    _
  %s10 = ssub.s32 1, %s8
  %s11 = scalar_select 0, %s10, %s8
  %12 = sst [smem:[#allocation2]] %s6
  $region1: #{reward_model_forward.1} parent=0
    #allocation3 [shape = 'u8[512]{0}', space=vmem, size = 0x400, scoped, tag = 'output window, operand 0, single buffered']
    #allocation4 [shape = 's32[1]{0}', space=sflag, size = 0x4, scoped, tag = 'scoped memory for reward_model_forward.1']
    %13 = vsyncpa [#allocation4], 0
    // Predicated region
    $region2: #{reward_model_forward.1} parent=1 // pred_check
      _
    $region3: #{reward_model_forward.1} parent=1 // pred_check_branch
      %15 = sbr.rel (0) target = $region5
    $region4: #{reward_model_forward.1} parent=1 // pred_region
      _
    $region5: #{reward_model_forward.1} parent=1 // pred_fallthru
      _
    // Predicated region
    $region6: #{reward_model_forward.1} parent=1 // pred_check
      _
    $region7: #{reward_model_forward.1} parent=1 // pred_check_branch
      %17 = sbr.rel (0) target = $region9
    $region8: #{reward_model_forward.1} parent=1 // pred_region
      _
    $region9: #{reward_model_forward.1} parent=1 // pred_fallthru
      _
    // Predicated region
    $region10: #{reward_model_forward.1} parent=1 // pred_check
      _
    $region11: #{reward_model_forward.1} parent=1 // pred_check_branch
      %19 = sbr.rel (0) target = $region13
    $region12: #{reward_model_forward.1} parent=1 // pred_region
      _
    $region13: #{reward_model_forward.1} parent=1 // pred_fallthru
      _
    // Predicated region
    $region14: #{reward_model_forward.1} parent=1 // pred_check
      _
    $region15: #{reward_model_forward.1} parent=1 // pred_check_branch
      %21 = sbr.rel (0) target = $region17
    $region16: #{reward_model_forward.1} parent=1 // pred_region
      _
    $region17: #{reward_model_forward.1} parent=1 // pred_fallthru
      _
    // Predicated region
    $region18: #{reward_model_forward.1} parent=1 // pred_check
      _
    $region19: #{reward_model_forward.1} parent=1 // pred_check_branch
      %23 = sbr.rel (0) target = $region21
    $region20: #{reward_model_forward.1} parent=1 // pred_region
      _
    $region21: #{reward_model_forward.1} parent=1 // pred_fallthru
      _
    // Predicated region
    $region22: #{reward_model_forward.1} parent=1 // pred_check
      _
    $region23: #{reward_model_forward.1} parent=1 // pred_check_branch
      %25 = sbr.rel (0) target = $region25
    $region24: #{reward_model_forward.1} parent=1 // pred_region
      _
    $region25: #{reward_model_forward.1} parent=1 // pred_fallthru
      _
    // Predicated region
    $region26: #{reward_model_forward.1} parent=1 // pred_check
      _
    $region27: #{reward_model_forward.1} parent=1 // pred_check_branch
      %27 = sbr.rel (0) target = $region29
    $region28: #{reward_model_forward.1} parent=1 // pred_region
      _
    $region29: #{reward_model_forward.1} parent=1 // pred_fallthru
      _
    %v28 = vld [vmem:[%s0] sm:$0xff]
    %v29 = vld [vmem:[%s2] sm:$0xff]
    %v30 = vld [vmem:[%s2 + $0x8] sm:$0xff]
    %v31 = vld [vmem:[%s1] sm:$0xff]
    %v32 = vld [vmem:[%s3] sm:$0xff]
    %v33 = vld [vmem:[%s3 + $0x8] sm:$0xff]
    %vm34 = vcmask 130048
    %v36 = vsel %vm34, %v31, 0
    %38 = vmatpush.msra.mxu0 0.0
    %39 = vmatpush.msra.mxu0 0.0
    %40 = vmatpush.msra.mxu0 0.0
    %41 = vmatpush.msra.mxu0 0.0
    %42 = vmatpush.msra.mxu0 0.0
    %43 = vmatpush.msra.mxu0 0.0
    %44 = vmatpush.msra.mxu0 0.0
    %45 = vmatpush.msra.mxu0 0.0
    %46 = vmatpush.msra.mxu0 0.0
    %47 = vmatpush.msra.mxu0 0.0
    %48 = vmatpush.msra.mxu0 0.0
    %49 = vmatpush.msra.mxu0 0.0
    %50 = vmatpush.msra.mxu0 0.0
    %51 = vmatpush.msra.mxu0 0.0
    %52 = vmatpush.msra.mxu0 %v33
    %53 = vmatpush.msra.mxu0 %v32
    %54 = vmatmul.f32.gmra.mxu0 %v36
    %v55 = vpop.f32.mrf.mxu0
    %v56 = vadd.f32 0.0, %v55
    %57 = vdwg.mxu0
    %v59 = vsel %vm34, %v28, 0
    %61 = vmatpush.msra.mxu0 0.0
    %62 = vmatpush.msra.mxu0 0.0
    %63 = vmatpush.msra.mxu0 0.0
    %64 = vmatpush.msra.mxu0 0.0
    %65 = vmatpush.msra.mxu0 0.0
    %66 = vmatpush.msra.mxu0 0.0
    %67 = vmatpush.msra.mxu0 0.0
    %68 = vmatpush.msra.mxu0 0.0
    %69 = vmatpush.msra.mxu0 0.0
    %70 = vmatpush.msra.mxu0 0.0
    %71 = vmatpush.msra.mxu0 0.0
    %72 = vmatpush.msra.mxu0 0.0
    %73 = vmatpush.msra.mxu0 0.0
    %74 = vmatpush.msra.mxu0 0.0
    %75 = vmatpush.msra.mxu0 %v30
    %76 = vmatpush.msra.mxu0 %v29
    %77 = vmatmul.f32.gmra.mxu0 %v59
    %v78 = vpop.f32.mrf.mxu0
    %v79 = vadd.f32 %v56, %v78
    %80 = vdwg.mxu0
    %v81 = vld [vmem:[%s4] sm:$0x1]
    %v83 = vperm.slane %v81, 0
    %v85 = vadd.f32 %v79, %v83
    %v86 = vmul.f32 %v85, 0.5
    %v87 = vtanh.pop %v86
    %v88 = vmul.f32 %v87, 0.5
    %v89 = vadd.f32 %v88, 0.5
    %v90 = vld [vmem:[%s5] sm:$0x1]
    %s91 = sld [smem:[#allocation2]]
    %v92 = vstv %s91
    %93 = vmatpush.xpose.msra.mxu0 0.0
    %94 = vmatpush.xpose.msra.mxu0 0.0
    %95 = vmatpush.xpose.msra.mxu0 0.0
    %96 = vmatpush.xpose.msra.mxu0 0.0
    %97 = vmatpush.xpose.msra.mxu0 0.0
    %98 = vmatpush.xpose.msra.mxu0 0.0
    %99 = vmatpush.xpose.msra.mxu0 0.0
    %100 = vmatpush.xpose.msra.mxu0 0.0
    %101 = vmatpush.xpose.msra.mxu0 0.0
    %102 = vmatpush.xpose.msra.mxu0 0.0
    %103 = vmatpush.xpose.msra.mxu0 0.0
    %104 = vmatpush.xpose.msra.mxu0 0.0
    %105 = vmatpush.xpose.msra.mxu0 0.0
    %106 = vmatpush.xpose.msra.mxu0 0.0
    %107 = vmatpush.xpose.msra.mxu0 0.0
    %108 = vmatpush.xpose.msra.mxu0 %v89
    %109 = vmatmul.f32.gmra.mxu0 %v90
    %v110 = vpop.f32.mrf.mxu0
    %v111 = vadd.f32 %v92, %v110
    %112 = vdwg.mxu0
    %vm113 = vcmask 57344
    %114 = vst.msk [vmem:[#allocation3] sm:$0x1] %vm113, %v111
    // Predicated region
    $region30: #{reward_model_forward.1} parent=1 // pred_check
      _
    $region31: #{reward_model_forward.1} parent=1 // pred_check_branch
      %116 = sbr.rel (0) target = $region33
    $region32: #{reward_model_forward.1} parent=1 // pred_region
      %118 = vsyncadd [#allocation4], 0
      %s120 = sshll.u32 [#allocation3], 4
      %s121 = int_to_ptr.vmem [resolvable:$true] %s120
      %s122 = sshll.u32 %s7, 4
      %s123 = int_to_ptr.hbm [resolvable:$true] %s122
      %125 = dma.vmem_to_hbm [thread:$0]  %s121, 16, %s123, [#allocation4]
    $region33: #{reward_model_forward.1} parent=1 // pred_fallthru
      _
    // Predicated region
    $region34: #{reward_model_forward.1} parent=1 // pred_check
      _
    $region35: #{reward_model_forward.1} parent=1 // pred_check_branch
      %127 = sbr.rel (0) target = $region37
    $region36: #{reward_model_forward.1} parent=1 // pred_region
      %129 = dma.done [#allocation4], 16
    $region37: #{reward_model_forward.1} parent=1 // pred_fallthru
      _
    %130 = vsyncpa [#allocation4], 1

</llo_original>
